<compile_context>
chip_gen: v6e
topology: v6e:2x2x1
jax: 0.10.0
libtpu: 0.0.40
codegen_flags: <defaults>
</compile_context>

<pallas_src>
import jax
import jax.numpy as jnp
from jax import lax
from jax.experimental import pallas as pl
from jax.experimental.pallas import tpu as pltpu


def _round_up(x, m):
    return ((x + m - 1) // m) * m


def _silu(x):
    # exp + reciprocal both land on the EUP slot; keeps VPU free for LN math.
    return x * pl.reciprocal(1.0 + jnp.exp(-x), approx=False)


def _make_edge_update_kernel(has_rbf, n_pad):
    """Kernel body.  Streams arrive edge-major; compute is feature-major.

    refs (has_rbf=True):
      src (1, TE) i32, dst (1, TE) i32, e (TE, F), d (TE, R),
      wn (F, 2*NPAD+R), w1e (F, F), b1 (F, 1),
      w2 (F, F), b2 (F, 1), gamma (F, 1), beta (F, 1), out (TE, F)
    """

    def kernel(*refs):
        if has_rbf:
            (src_ref, dst_ref, e_ref, d_ref,
             wn_ref, w1e_ref, b1_ref, w2_ref, b2_ref,
             gamma_ref, beta_ref, o_ref) = refs
        else:
            (src_ref, dst_ref, e_ref,
             wn_ref, w1e_ref, b1_ref, w2_ref, b2_ref,
             gamma_ref, beta_ref, o_ref) = refs

        f32 = jnp.float32
        cdt = wn_ref.dtype            # matmul operand dtype (bf16 default)
        tile_e = o_ref.shape[0]

        # Residual / matmul operand: one in-kernel transpose to feature-major.
        e_t = e_ref[...].astype(f32).T                        # (F, TE)

        # In-kernel gather: one_hot(src/dst) built on the VPU, contracted on
        # the MXU against the pre-projected node table (wrapper computed
        # node_scalars @ W1_src / W1_dst once).  RBF stream is fused into the
        # same dot so Linear-1 is two dots instead of four tiny-K dots.
        iota = lax.broadcasted_iota(jnp.int32, (n_pad, tile_e), 0)
        parts = [(iota == src_ref[...]).astype(f32),
                 (iota == dst_ref[...]).astype(f32)]
        if has_rbf:
            parts.append(d_ref[...].astype(f32).T)            # (R, TE)
        rhs = jnp.concatenate(parts, axis=0).astype(cdt)      # (2*NPAD[+R], TE)

        h = jnp.dot(wn_ref[...], rhs, preferred_element_type=f32)
        h = h + jnp.dot(w1e_ref[...], e_t.astype(cdt),
                        preferred_element_type=f32)
        h = _silu(h + b1_ref[...])

        # Linear 2 + SiLU.
        h = jnp.dot(w2_ref[...], h.astype(cdt), preferred_element_type=f32)
        h = _silu(h + b2_ref[...])

        # Residual + LayerNorm over the feature (sublane) axis.
        y = e_t + h
        mean = jnp.mean(y, axis=0, keepdims=True)
        var = jnp.mean(jnp.square(y - mean), axis=0, keepdims=True)
        y_hat = (y - mean) * lax.rsqrt(var + 1e-5)
        out_t = y_hat * gamma_ref[...] + beta_ref[...]        # (F, TE)

        # Emit directly in the consumer's edge-major layout (no wrapper
        # transpose round-trip).  For production F >= 128 this is lane-dense.
        o_ref[...] = out_t.T.astype(o_ref.dtype)

    return kernel


def _edge_update_pallas(src2, dst2, edge_p, d_p, wn, w1e_t, b1, w2_t, b2,
                        gamma, beta, *, n_pad, tile_e, out_dtype,
                        vmem_limit_bytes):
    E_pad, F = edge_p.shape
    has_rbf = d_p is not None
    grid = (E_pad // tile_e,)

    edge_row = lambda i: (i, 0)   # blocked along leading (edge) axis
    edge_col = lambda i: (0, i)   # blocked along trailing (edge) axis (indices)
    full = lambda i: (0, 0)       # resident weights

    in_arrays = [src2, dst2, edge_p]
    in_specs = [
        pl.BlockSpec((1, tile_e), edge_col),
        pl.BlockSpec((1, tile_e), edge_col),
        pl.BlockSpec((tile_e, F), edge_row),
    ]
    if has_rbf:
        in_arrays.append(d_p)
        in_specs.append(pl.BlockSpec((tile_e, d_p.shape[1]), edge_row))
    for w in (wn, w1e_t, b1, w2_t, b2, gamma, beta):
        in_arrays.append(w)
        in_specs.append(pl.BlockSpec(w.shape, full))

    return pl.pallas_call(
        _make_edge_update_kernel(has_rbf, n_pad),
        out_shape=jax.ShapeDtypeStruct((E_pad, F), out_dtype),
        grid_spec=pltpu.PrefetchScalarGridSpec(
            num_scalar_prefetch=0,
            grid=grid,
            in_specs=in_specs,
            out_specs=pl.BlockSpec((tile_e, F), edge_row),
        ),
        compiler_params=pltpu.CompilerParams(
            dimension_semantics=("parallel",),
            vmem_limit_bytes=vmem_limit_bytes),
    )(*in_arrays)


class EdgeUpdateParams:
    """Deterministic parameter init mirroring nn.Linear / nn.LayerNorm shapes."""

    def __init__(self, key, n_node_scalars, n_edge_feats,
                 update_edge_w_distance=False, rbf_dim=16):
        self.update_edge_w_distance = update_edge_w_distance
        input_dim = n_node_scalars * 2 + n_edge_feats
        if update_edge_w_distance:
            input_dim += rbf_dim
        k1, k2, k3, k4 = jax.random.split(key, 4)
        lim1 = 1.0 / jnp.sqrt(input_dim)
        lim2 = 1.0 / jnp.sqrt(n_edge_feats)
        # Weights stored as (in, out) so the reference does x @ W.
        self.w1 = jax.random.uniform(k1, (input_dim, n_edge_feats),
                                     jnp.float32, -lim1, lim1)
        self.b1 = jax.random.uniform(k2, (1, n_edge_feats),
                                     jnp.float32, -lim1, lim1)
        self.w2 = jax.random.uniform(k3, (n_edge_feats, n_edge_feats),
                                     jnp.float32, -lim2, lim2)
        self.b2 = jax.random.uniform(k4, (1, n_edge_feats),
                                     jnp.float32, -lim2, lim2)
        self.gamma = jnp.ones((1, n_edge_feats), jnp.float32)
        self.beta = jnp.zeros((1, n_edge_feats), jnp.float32)


def edge_update_forward(params, src_idxs, dst_idxs, node_scalars, edge_feats,
                        d=None, *, tile_e=8192, matmul_dtype=jnp.bfloat16,
                        out_dtype=None, vmem_limit_bytes=48 * 1024 * 1024):
    """EdgeUpdate forward.  matmul_dtype affects matmul operands only; the
    residual stream, LayerNorm and accumulation stay f32.

    v7x note: raise tile_e (16-32K at F=32) and vmem_limit_bytes together, and
    keep E_pad // tile_e >= 2 so both TensorCores are fed.
    """
    E, F = edge_feats.shape
    N, S = node_scalars.shape
    has_rbf = params.update_edge_w_distance
    out_dtype = edge_feats.dtype if out_dtype is None else out_dtype
    f32 = jnp.float32
    hi = jax.lax.Precision.HIGHEST

    # TODO(synk): for very large node tables (2*n_nodes in the thousands) the
    # one-hot MXU gather stops paying off; switch to a scalar-prefetched DMA
    # gather of node rows instead.

    # ---- Tiny wrapper-side weight re-packing (O(F*(N+F+R)), no per-edge work).
    w1 = params.w1.astype(f32)
    n_pad = _round_up(max(N, 8), 8)
    # Pre-project the node table through W1's src/dst row blocks.
    p_src = jnp.dot(node_scalars.astype(f32), w1[:S], precision=hi).T       # (F, N)
    p_dst = jnp.dot(node_scalars.astype(f32), w1[S:2 * S], precision=hi).T  # (F, N)
    pad_n = ((0, 0), (0, n_pad - N))
    wn_parts = [jnp.pad(p_src, pad_n), jnp.pad(p_dst, pad_n)]
    if has_rbf:
        wn_parts.append(w1[2 * S + F:].T)                                   # (F, R)
    wn = jnp.concatenate(wn_parts, axis=1).astype(matmul_dtype)  # (F, 2*NPAD[+R])
    w1e_t = w1[2 * S:2 * S + F].T.astype(matmul_dtype)           # (F, F)
    w2_t = params.w2.T.astype(matmul_dtype)                      # (F, F)
    b1 = params.b1.reshape(F, 1).astype(f32)
    b2 = params.b2.reshape(F, 1).astype(f32)
    gamma = params.gamma.reshape(F, 1).astype(f32)
    beta = params.beta.reshape(F, 1).astype(f32)

    # ---- Per-edge arrays: natural edge-major layout, pad edge axis only.
    tile_e = max(128, min(tile_e, _round_up(E, 128)))
    E_pad = _round_up(E, tile_e)
    pad_e = E_pad - E

    src2 = jnp.pad(src_idxs.astype(jnp.int32), (0, pad_e)).reshape(1, E_pad)
    dst2 = jnp.pad(dst_idxs.astype(jnp.int32), (0, pad_e)).reshape(1, E_pad)
    edge_p = jnp.pad(edge_feats.astype(f32), ((0, pad_e), (0, 0)))
    d_p = (jnp.pad(d.astype(matmul_dtype), ((0, pad_e), (0, 0)))
           if has_rbf else None)

    out = _edge_update_pallas(src2, dst2, edge_p, d_p, wn, w1e_t, b1, w2_t,
                              b2, gamma, beta, n_pad=n_pad, tile_e=tile_e,
                              out_dtype=out_dtype,
                              vmem_limit_bytes=vmem_limit_bytes)
    return out[:E]


def _reference(params, src_idxs, dst_idxs, node_scalars, edge_feats, d=None):
    mlp_inputs = [node_scalars[src_idxs], node_scalars[dst_idxs], edge_feats]
    if params.update_edge_w_distance:
        mlp_inputs.append(d)
    x = jnp.concatenate(mlp_inputs, axis=-1)
    h = jax.nn.silu(x @ params.w1 + params.b1)
    h = jax.nn.silu(h @ params.w2 + params.b2)
    y = edge_feats + h
    mean = jnp.mean(y, axis=-1, keepdims=True)
    var = jnp.mean(jnp.square(y - mean), axis=-1, keepdims=True)
    return (y - mean) / jnp.sqrt(var + 1e-5) * params.gamma + params.beta


if __name__ == "__main__":
    key = jax.random.PRNGKey(0)
    (k_param, k_param2, k_node, k_edge,
     k_d, k_src, k_dst) = jax.random.split(key, 7)

    n_nodes = 10
    n_edges = 16
    n_node_scalars = 8
    n_edge_feats = 32
    rbf_dim = 16

    node_scalars = jax.random.normal(k_node, (n_nodes, n_node_scalars), jnp.float32)
    edge_feats = jax.random.normal(k_edge, (n_edges, n_edge_feats), jnp.float32)
    d = jax.random.normal(k_d, (n_edges, rbf_dim), jnp.float32)
    src_idxs = jax.random.randint(k_src, (n_edges,), 0, n_nodes)
    dst_idxs = jax.random.randint(k_dst, (n_edges,), 0, n_nodes)

    # --- with the distance (RBF) stream --------------------------------------
    params = EdgeUpdateParams(k_param, n_node_scalars, n_edge_feats,
                              update_edge_w_distance=True, rbf_dim=rbf_dim)
    ref = _reference(params, src_idxs, dst_idxs, node_scalars, edge_feats, d)

    # f32 matmul operands: tight check against the f32 reference.
    out_f32 = edge_update_forward(params, src_idxs, dst_idxs, node_scalars,
                                  edge_feats, d, matmul_dtype=jnp.float32)
    out_f32 = jax.block_until_ready(out_f32)
    assert out_f32.shape == (n_edges, n_edge_feats)
    assert jnp.allclose(out_f32, ref, atol=2e-4, rtol=2e-4), \
        float(jnp.max(jnp.abs(out_f32 - ref)))

    # Default path (bf16 matmul operands, per perf review): relaxed tolerance.
    out_bf16 = edge_update_forward(params, src_idxs, dst_idxs, node_scalars,
                                   edge_feats, d)
    out_bf16 = jax.block_until_ready(out_bf16)
    assert out_bf16.shape == (n_edges, n_edge_feats)
    assert jnp.allclose(out_bf16, ref, atol=1e-1, rtol=1e-1), \
        float(jnp.max(jnp.abs(out_bf16 - ref)))

    # --- without the distance stream ------------------------------------------
    params_nd = EdgeUpdateParams(k_param2, n_node_scalars, n_edge_feats,
                                 update_edge_w_distance=False)
    ref_nd = _reference(params_nd, src_idxs, dst_idxs, node_scalars, edge_feats)
    out_nd = edge_update_forward(params_nd, src_idxs, dst_idxs, node_scalars,
                                 edge_feats, matmul_dtype=jnp.float32)
    out_nd = jax.block_until_ready(out_nd)
    assert jnp.allclose(out_nd, ref_nd, atol=2e-4, rtol=2e-4), \
        float(jnp.max(jnp.abs(out_nd - ref_nd)))

    print("KERNEL_OK")
</pallas_src>

<mosaic_0001>
module attributes {stable_mosaic.version = 11 : i64} {
  func.func @kernel(%arg0: i32, %arg1: memref<1x128xi32, #tpu.memory_space<vmem>>, %arg2: memref<1x128xi32, #tpu.memory_space<vmem>>, %arg3: memref<128x32xf32, #tpu.memory_space<vmem>>, %arg4: memref<128x16xf32, #tpu.memory_space<vmem>>, %arg5: memref<32x48xf32, #tpu.memory_space<vmem>>, %arg6: memref<32x32xf32, #tpu.memory_space<vmem>>, %arg7: memref<32x1xf32, #tpu.memory_space<vmem>>, %arg8: memref<32x32xf32, #tpu.memory_space<vmem>>, %arg9: memref<32x1xf32, #tpu.memory_space<vmem>>, %arg10: memref<32x1xf32, #tpu.memory_space<vmem>>, %arg11: memref<32x1xf32, #tpu.memory_space<vmem>>, %arg12: memref<128x32xf32, #tpu.memory_space<vmem>>) attributes {dimension_semantics = [#tpu.dimension_semantics<parallel>], iteration_bounds = array<i64: 1>, scalar_prefetch = 0 : i64, scratch_operands = 0 : i64, tpu.core_type = #tpu.core_type<tc>, window_params = [{transform_indices = @transform_0, window_bounds = array<i64: 1, 128>}, {transform_indices = @transform_1, window_bounds = array<i64: 1, 128>}, {transform_indices = @transform_2, window_bounds = array<i64: 128, 32>}, {transform_indices = @transform_3, window_bounds = array<i64: 128, 16>}, {pipeline_mode = #tpu.pipeline_mode<synchronous>, transform_indices = @transform_4, window_bounds = array<i64: 32, 48>}, {pipeline_mode = #tpu.pipeline_mode<synchronous>, transform_indices = @transform_5, window_bounds = array<i64: 32, 32>}, {pipeline_mode = #tpu.pipeline_mode<synchronous>, transform_indices = @transform_6, window_bounds = array<i64: 32, 1>}, {pipeline_mode = #tpu.pipeline_mode<synchronous>, transform_indices = @transform_7, window_bounds = array<i64: 32, 32>}, {pipeline_mode = #tpu.pipeline_mode<synchronous>, transform_indices = @transform_8, window_bounds = array<i64: 32, 1>}, {pipeline_mode = #tpu.pipeline_mode<synchronous>, transform_indices = @transform_9, window_bounds = array<i64: 32, 1>}, {pipeline_mode = #tpu.pipeline_mode<synchronous>, transform_indices = @transform_10, window_bounds = array<i64: 32, 1>}, {transform_indices = @transform_11, window_bounds = array<i64: 128, 32>}]} {
    %c0 = arith.constant 0 : index
    %c0_0 = arith.constant 0 : index
    %0 = vector.load %arg3[%c0, %c0_0] : memref<128x32xf32, #tpu.memory_space<vmem>>, vector<128x32xf32>
    %1 = tpu.transpose %0, [1, 0] : vector<128x32xf32> -> vector<32x128xf32>
    %2 = tpu.iota {dimensions = array<i32: 0>} : vector<16x128xi32>
    %c0_1 = arith.constant 0 : index
    %c0_2 = arith.constant 0 : index
    %3 = vector.load %arg1[%c0_1, %c0_2] : memref<1x128xi32, #tpu.memory_space<vmem>>, vector<1x128xi32>
    %4 = vector.broadcast %3 : vector<1x128xi32> to vector<16x128xi32>
    %5 = arith.cmpi eq, %2, %4 : vector<16x128xi32>
    %6 = arith.extui %5 : vector<16x128xi1> to vector<16x128xi32>
    %7 = arith.sitofp %6 : vector<16x128xi32> to vector<16x128xf32>
    %c0_3 = arith.constant 0 : index
    %c0_4 = arith.constant 0 : index
    %8 = vector.load %arg2[%c0_3, %c0_4] : memref<1x128xi32, #tpu.memory_space<vmem>>, vector<1x128xi32>
    %9 = vector.broadcast %8 : vector<1x128xi32> to vector<16x128xi32>
    %10 = arith.cmpi eq, %2, %9 : vector<16x128xi32>
    %11 = arith.extui %10 : vector<16x128xi1> to vector<16x128xi32>
    %12 = arith.sitofp %11 : vector<16x128xi32> to vector<16x128xf32>
    %c0_5 = arith.constant 0 : index
    %c0_6 = arith.constant 0 : index
    %13 = vector.load %arg4[%c0_5, %c0_6] : memref<128x16xf32, #tpu.memory_space<vmem>>, vector<128x16xf32>
    %14 = tpu.transpose %13, [1, 0] : vector<128x16xf32> -> vector<16x128xf32>
    %15 = tpu.concatenate %7, %12, %14 in 0 : vector<16x128xf32>, vector<16x128xf32>, vector<16x128xf32> -> vector<48x128xf32>
    %c0_7 = arith.constant 0 : index
    %c0_8 = arith.constant 0 : index
    %16 = vector.load %arg5[%c0_7, %c0_8] : memref<32x48xf32, #tpu.memory_space<vmem>>, vector<32x48xf32>
    %cst = arith.constant dense<0.000000e+00> : vector<32x128xf32>
    %17 = tpu.matmul %16, %15, %cst {dimension_numbers = #tpu.dot_dimension_numbers<[1], [0], [0], [1], [0, 0, 1, 1], [], []>} : vector<32x48xf32>, vector<48x128xf32>, vector<32x128xf32> -> vector<32x128xf32>
    %c0_9 = arith.constant 0 : index
    %c0_10 = arith.constant 0 : index
    %18 = vector.load %arg6[%c0_9, %c0_10] : memref<32x32xf32, #tpu.memory_space<vmem>>, vector<32x32xf32>
    %cst_11 = arith.constant dense<0.000000e+00> : vector<32x128xf32>
    %19 = tpu.matmul %18, %1, %cst_11 {dimension_numbers = #tpu.dot_dimension_numbers<[1], [0], [0], [1], [0, 0, 1, 1], [], []>} : vector<32x32xf32>, vector<32x128xf32>, vector<32x128xf32> -> vector<32x128xf32>
    %20 = arith.addf %17, %19 : vector<32x128xf32>
    %c0_12 = arith.constant 0 : index
    %c0_13 = arith.constant 0 : index
    %21 = vector.load %arg7[%c0_12, %c0_13] : memref<32x1xf32, #tpu.memory_space<vmem>>, vector<32x1xf32>
    %22 = vector.broadcast %21 : vector<32x1xf32> to vector<32x128xf32>
    %23 = arith.addf %20, %22 : vector<32x128xf32>
    %cst_14 = arith.constant 0.000000e+00 : f32
    %24 = vector.broadcast %cst_14 : f32 to vector<32x128xf32>
    %25 = arith.subf %24, %23 : vector<32x128xf32>
    %26 = math.exp %25 : vector<32x128xf32>
    %cst_15 = arith.constant 1.000000e+00 : f32
    %27 = vector.broadcast %cst_15 : f32 to vector<32x128xf32>
    %28 = arith.addf %27, %26 : vector<32x128xf32>
    %29 = tpu.reciprocal %28 : vector<32x128xf32> -> vector<32x128xf32>
    %30 = arith.mulf %23, %29 : vector<32x128xf32>
    %c0_16 = arith.constant 0 : index
    %c0_17 = arith.constant 0 : index
    %31 = vector.load %arg8[%c0_16, %c0_17] : memref<32x32xf32, #tpu.memory_space<vmem>>, vector<32x32xf32>
    %cst_18 = arith.constant dense<0.000000e+00> : vector<32x128xf32>
    %32 = tpu.matmul %31, %30, %cst_18 {dimension_numbers = #tpu.dot_dimension_numbers<[1], [0], [0], [1], [0, 0, 1, 1], [], []>} : vector<32x32xf32>, vector<32x128xf32>, vector<32x128xf32> -> vector<32x128xf32>
    %c0_19 = arith.constant 0 : index
    %c0_20 = arith.constant 0 : index
    %33 = vector.load %arg9[%c0_19, %c0_20] : memref<32x1xf32, #tpu.memory_space<vmem>>, vector<32x1xf32>
    %34 = vector.broadcast %33 : vector<32x1xf32> to vector<32x128xf32>
    %35 = arith.addf %32, %34 : vector<32x128xf32>
    %cst_21 = arith.constant 0.000000e+00 : f32
    %36 = vector.broadcast %cst_21 : f32 to vector<32x128xf32>
    %37 = arith.subf %36, %35 : vector<32x128xf32>
    %38 = math.exp %37 : vector<32x128xf32>
    %cst_22 = arith.constant 1.000000e+00 : f32
    %39 = vector.broadcast %cst_22 : f32 to vector<32x128xf32>
    %40 = arith.addf %39, %38 : vector<32x128xf32>
    %41 = tpu.reciprocal %40 : vector<32x128xf32> -> vector<32x128xf32>
    %42 = arith.mulf %35, %41 : vector<32x128xf32>
    %43 = arith.addf %1, %42 : vector<32x128xf32>
    %cst_23 = arith.constant dense<0.000000e+00> : vector<128xf32>
    %44 = vector.multi_reduction <add>, %43, %cst_23 [0] : vector<32x128xf32> to vector<128xf32>
    %45 = vector.shape_cast %44 : vector<128xf32> to vector<1x128xf32>
    %cst_24 = arith.constant 3.200000e+01 : f32
    %46 = vector.broadcast %cst_24 : f32 to vector<1x128xf32>
    %47 = arith.divf %45, %46 : vector<1x128xf32>
    %48 = vector.broadcast %47 : vector<1x128xf32> to vector<32x128xf32>
    %49 = arith.subf %43, %48 : vector<32x128xf32>
    %50 = arith.mulf %49, %49 : vector<32x128xf32>
    %cst_25 = arith.constant dense<0.000000e+00> : vector<128xf32>
    %51 = vector.multi_reduction <add>, %50, %cst_25 [0] : vector<32x128xf32> to vector<128xf32>
    %52 = vector.shape_cast %51 : vector<128xf32> to vector<1x128xf32>
    %cst_26 = arith.constant 3.200000e+01 : f32
    %53 = vector.broadcast %cst_26 : f32 to vector<1x128xf32>
    %54 = arith.divf %52, %53 : vector<1x128xf32>
    %55 = vector.broadcast %47 : vector<1x128xf32> to vector<32x128xf32>
    %56 = arith.subf %43, %55 : vector<32x128xf32>
    %cst_27 = arith.constant 9.99999974E-6 : f32
    %57 = vector.broadcast %cst_27 : f32 to vector<1x128xf32>
    %58 = arith.addf %54, %57 : vector<1x128xf32>
    %59 = math.rsqrt %58 : vector<1x128xf32>
    %60 = vector.broadcast %59 : vector<1x128xf32> to vector<32x128xf32>
    %61 = arith.mulf %56, %60 : vector<32x128xf32>
    %c0_28 = arith.constant 0 : index
    %c0_29 = arith.constant 0 : index
    %62 = vector.load %arg10[%c0_28, %c0_29] : memref<32x1xf32, #tpu.memory_space<vmem>>, vector<32x1xf32>
    %63 = vector.broadcast %62 : vector<32x1xf32> to vector<32x128xf32>
    %64 = arith.mulf %61, %63 : vector<32x128xf32>
    %c0_30 = arith.constant 0 : index
    %c0_31 = arith.constant 0 : index
    %65 = vector.load %arg11[%c0_30, %c0_31] : memref<32x1xf32, #tpu.memory_space<vmem>>, vector<32x1xf32>
    %66 = vector.broadcast %65 : vector<32x1xf32> to vector<32x128xf32>
    %67 = arith.addf %64, %66 : vector<32x128xf32>
    %68 = tpu.transpose %67, [1, 0] : vector<32x128xf32> -> vector<128x32xf32>
    %c0_32 = arith.constant 0 : index
    %c0_33 = arith.constant 0 : index
    %69 = vector.load %arg12[%c0_32, %c0_33] : memref<128x32xf32, #tpu.memory_space<vmem>>, vector<128x32xf32>
    tpu.vector_store %arg12[%c0_32, %c0_33], %68 {strides = array<i32>} : memref<128x32xf32, #tpu.memory_space<vmem>>, vector<128x32xf32>,
    return
  }
  func.func @transform_0(%arg0: i32) -> (i32, i32) {
    %c0_i32 = arith.constant 0 : i32
    %c0_i32_0 = arith.constant 0 : i32
    return %c0_i32, %arg0 : i32, i32
  }
  func.func @transform_1(%arg0: i32) -> (i32, i32) {
    %c0_i32 = arith.constant 0 : i32
    %c0_i32_0 = arith.constant 0 : i32
    return %c0_i32, %arg0 : i32, i32
  }
  func.func @transform_2(%arg0: i32) -> (i32, i32) {
    %c0_i32 = arith.constant 0 : i32
    %c0_i32_0 = arith.constant 0 : i32
    return %arg0, %c0_i32 : i32, i32
  }
  func.func @transform_3(%arg0: i32) -> (i32, i32) {
    %c0_i32 = arith.constant 0 : i32
    %c0_i32_0 = arith.constant 0 : i32
    return %arg0, %c0_i32 : i32, i32
  }
  func.func @transform_4(%arg0: i32) -> (i32, i32) {
    %c0_i32 = arith.constant 0 : i32
    %c0_i32_0 = arith.constant 0 : i32
    %c0_i32_1 = arith.constant 0 : i32
    return %c0_i32, %c0_i32_0 : i32, i32
  }
  func.func @transform_5(%arg0: i32) -> (i32, i32) {
    %c0_i32 = arith.constant 0 : i32
    %c0_i32_0 = arith.constant 0 : i32
    %c0_i32_1 = arith.constant 0 : i32
    return %c0_i32, %c0_i32_0 : i32, i32
  }
  func.func @transform_6(%arg0: i32) -> (i32, i32) {
    %c0_i32 = arith.constant 0 : i32
    %c0_i32_0 = arith.constant 0 : i32
    %c0_i32_1 = arith.constant 0 : i32
    return %c0_i32, %c0_i32_0 : i32, i32
  }
  func.func @transform_7(%arg0: i32) -> (i32, i32) {
    %c0_i32 = arith.constant 0 : i32
    %c0_i32_0 = arith.constant 0 : i32
    %c0_i32_1 = arith.constant 0 : i32
    return %c0_i32, %c0_i32_0 : i32, i32
  }
  func.func @transform_8(%arg0: i32) -> (i32, i32) {
    %c0_i32 = arith.constant 0 : i32
    %c0_i32_0 = arith.constant 0 : i32
    %c0_i32_1 = arith.constant 0 : i32
    return %c0_i32, %c0_i32_0 : i32, i32
  }
  func.func @transform_9(%arg0: i32) -> (i32, i32) {
    %c0_i32 = arith.constant 0 : i32
    %c0_i32_0 = arith.constant 0 : i32
    %c0_i32_1 = arith.constant 0 : i32
    return %c0_i32, %c0_i32_0 : i32, i32
  }
  func.func @transform_10(%arg0: i32) -> (i32, i32) {
    %c0_i32 = arith.constant 0 : i32
    %c0_i32_0 = arith.constant 0 : i32
    %c0_i32_1 = arith.constant 0 : i32
    return %c0_i32, %c0_i32_0 : i32, i32
  }
  func.func @transform_11(%arg0: i32) -> (i32, i32) {
    %c0_i32 = arith.constant 0 : i32
    %c0_i32_0 = arith.constant 0 : i32
    return %arg0, %c0_i32 : i32, i32
  }
}

</mosaic_0001>

<llo_original>
// kernel: tpu_custom_call.1
$region0: #{tpu_custom_call.1}
  #allocation0 [shape = 'u32[]', space=smem, size = 0x4, offset = 0x4, fixed_abs, tag = 'smem constant byte address 0x4 - core index']
  #allocation1 [shape = 'u32[144,128]{1,0:T(1,128)}', space=vmem, size = 0x12000, scoped, tag = 'internal scratch']
  %s0 = inlined_call_operand.vmem [shape: s32[1,128], index: 0, kind: input, shape index: {}]
  %s1 = inlined_call_operand.vmem [shape: s32[1,128], index: 1, kind: input, shape index: {}]
  %s2 = inlined_call_operand.vmem [shape: f32[128,32], index: 2, kind: input, shape index: {}]
  %s3 = inlined_call_operand.vmem [shape: f32[128,16], index: 3, kind: input, shape index: {}]
  %s4 = inlined_call_operand.vmem [shape: f32[32,48], index: 4, kind: input, shape index: {}]
  %s5 = inlined_call_operand.vmem [shape: f32[32,32], index: 5, kind: input, shape index: {}]
  %s6 = inlined_call_operand.vmem [shape: f32[32,1], index: 6, kind: input, shape index: {}]
  %s7 = inlined_call_operand.vmem [shape: f32[32,32], index: 7, kind: input, shape index: {}]
  %s8 = inlined_call_operand.vmem [shape: f32[32,1], index: 8, kind: input, shape index: {}]
  %s9 = inlined_call_operand.vmem [shape: f32[32,1], index: 9, kind: input, shape index: {}]
  %s10 = inlined_call_operand.vmem [shape: f32[32,1], index: 10, kind: input, shape index: {}]
  %s11 = inlined_call_operand.vmem [shape: f32[128,32], index: 11, kind: output, shape index: {}]
  %s12 = sld [smem:[#allocation0]]
  $region54: #{tpu_custom_call.1} parent=0
    _
  %s14 = ssub.s32 1, %s12
  %s15 = scalar_select 0, %s14, %s12
  // Predicated region
  $region2: #{tpu_custom_call.1} parent=0 // pred_check
    _
  $region3: #{tpu_custom_call.1} parent=0 // pred_check_branch
    %17 = sbr.rel (0) target = $region5
  $region4: #{tpu_custom_call.1} parent=0 // pred_region
    _
  $region5: #{tpu_custom_call.1} parent=0 // pred_fallthru
    _
  // Predicated region
  $region6: #{tpu_custom_call.1} parent=0 // pred_check
    _
  $region7: #{tpu_custom_call.1} parent=0 // pred_check_branch
    %19 = sbr.rel (0) target = $region9
  $region8: #{tpu_custom_call.1} parent=0 // pred_region
    _
  $region9: #{tpu_custom_call.1} parent=0 // pred_fallthru
    _
  // Predicated region
  $region10: #{tpu_custom_call.1} parent=0 // pred_check
    _
  $region11: #{tpu_custom_call.1} parent=0 // pred_check_branch
    %21 = sbr.rel (0) target = $region13
  $region12: #{tpu_custom_call.1} parent=0 // pred_region
    _
  $region13: #{tpu_custom_call.1} parent=0 // pred_fallthru
    _
  // Predicated region
  $region14: #{tpu_custom_call.1} parent=0 // pred_check
    _
  $region15: #{tpu_custom_call.1} parent=0 // pred_check_branch
    %23 = sbr.rel (0) target = $region17
  $region16: #{tpu_custom_call.1} parent=0 // pred_region
    _
  $region17: #{tpu_custom_call.1} parent=0 // pred_fallthru
    _
  // Predicated region
  $region18: #{tpu_custom_call.1} parent=0 // pred_check
    _
  $region19: #{tpu_custom_call.1} parent=0 // pred_check_branch
    %25 = sbr.rel (0) target = $region21
  $region20: #{tpu_custom_call.1} parent=0 // pred_region
    _
  $region21: #{tpu_custom_call.1} parent=0 // pred_fallthru
    _
  // Predicated region
  $region22: #{tpu_custom_call.1} parent=0 // pred_check
    _
  $region23: #{tpu_custom_call.1} parent=0 // pred_check_branch
    %27 = sbr.rel (0) target = $region25
  $region24: #{tpu_custom_call.1} parent=0 // pred_region
    _
  $region25: #{tpu_custom_call.1} parent=0 // pred_fallthru
    _
  // Predicated region
  $region26: #{tpu_custom_call.1} parent=0 // pred_check
    _
  $region27: #{tpu_custom_call.1} parent=0 // pred_check_branch
    %29 = sbr.rel (0) target = $region29
  $region28: #{tpu_custom_call.1} parent=0 // pred_region
    _
  $region29: #{tpu_custom_call.1} parent=0 // pred_fallthru
    _
  // Predicated region
  $region30: #{tpu_custom_call.1} parent=0 // pred_check
    _
  $region31: #{tpu_custom_call.1} parent=0 // pred_check_branch
    %31 = sbr.rel (0) target = $region33
  $region32: #{tpu_custom_call.1} parent=0 // pred_region
    _
  $region33: #{tpu_custom_call.1} parent=0 // pred_fallthru
    _
  // Predicated region
  $region34: #{tpu_custom_call.1} parent=0 // pred_check
    _
  $region35: #{tpu_custom_call.1} parent=0 // pred_check_branch
    %33 = sbr.rel (0) target = $region37
  $region36: #{tpu_custom_call.1} parent=0 // pred_region
    _
  $region37: #{tpu_custom_call.1} parent=0 // pred_fallthru
    _
  // Predicated region
  $region38: #{tpu_custom_call.1} parent=0 // pred_check
    _
  $region39: #{tpu_custom_call.1} parent=0 // pred_check_branch
    %35 = sbr.rel (0) target = $region41
  $region40: #{tpu_custom_call.1} parent=0 // pred_region
    _
  $region41: #{tpu_custom_call.1} parent=0 // pred_fallthru
    _
  // Predicated region
  $region42: #{tpu_custom_call.1} parent=0 // pred_check
    _
  $region43: #{tpu_custom_call.1} parent=0 // pred_check_branch
    %37 = sbr.rel (0) target = $region45
  $region44: #{tpu_custom_call.1} parent=0 // pred_region
    _
  $region45: #{tpu_custom_call.1} parent=0 // pred_fallthru
    _
  %v38 = vld [vmem:[%s2] sm:$0xff]
  %v39 = vld [vmem:[%s2 + $0x8] sm:$0xff]
  %v40 = vld [vmem:[%s2 + $0x10] sm:$0xff]
  %v41 = vld [vmem:[%s2 + $0x18] sm:$0xff]
  %v42 = vld [vmem:[%s2 + $0x20] sm:$0xff]
  %v43 = vld [vmem:[%s2 + $0x28] sm:$0xff]
  %v44 = vld [vmem:[%s2 + $0x30] sm:$0xff]
  %v45 = vld [vmem:[%s2 + $0x38] sm:$0xff]
  %v46 = vld [vmem:[%s2 + $0x40] sm:$0xff]
  %v47 = vld [vmem:[%s2 + $0x48] sm:$0xff]
  %v48 = vld [vmem:[%s2 + $0x50] sm:$0xff]
  %v49 = vld [vmem:[%s2 + $0x58] sm:$0xff]
  %v50 = vld [vmem:[%s2 + $0x60] sm:$0xff]
  %v51 = vld [vmem:[%s2 + $0x68] sm:$0xff]
  %v52 = vld [vmem:[%s2 + $0x70] sm:$0xff]
  %v53 = vld [vmem:[%s2 + $0x78] sm:$0xff]
  %54 = vxpose.xlu0.b32.start [1/16] %v38, 128
  %55 = vxpose.xlu0.b32.cont [2/16] %v39, 128
  %56 = vxpose.xlu0.b32.cont [3/16] %v40, 128
  %57 = vxpose.xlu0.b32.cont [4/16] %v41, 128
  %58 = vxpose.xlu0.b32.cont [5/16] %v42, 128
  %59 = vxpose.xlu0.b32.cont [6/16] %v43, 128
  %60 = vxpose.xlu0.b32.cont [7/16] %v44, 128
  %61 = vxpose.xlu0.b32.cont [8/16] %v45, 128
  %62 = vxpose.xlu0.b32.cont [9/16] %v46, 128
  %63 = vxpose.xlu0.b32.cont [10/16] %v47, 128
  %64 = vxpose.xlu0.b32.cont [11/16] %v48, 128
  %65 = vxpose.xlu0.b32.cont [12/16] %v49, 128
  %66 = vxpose.xlu0.b32.cont [13/16] %v50, 128
  %67 = vxpose.xlu0.b32.cont [14/16] %v51, 128
  %68 = vxpose.xlu0.b32.cont [15/16] %v52, 128
  %69 = vxpose.xlu0.b32.end [16/16] %v53, 128
  %v70 = vpop.trf.xlu0
  %v71 = vpop.trf.xlu0
  %v72 = vpop.trf.xlu0
  %v73 = vpop.trf.xlu0
  %v74 = vpop.trf.xlu0
  %v75 = vpop.trf.xlu0
  %v76 = vpop.trf.xlu0
  %v77 = vpop.trf.xlu0
  %v78 = vpop.trf.xlu0
  %v79 = vpop.trf.xlu0
  %v80 = vpop.trf.xlu0
  %v81 = vpop.trf.xlu0
  %v82 = vpop.trf.xlu0
  %v83 = vpop.trf.xlu0
  %v84 = vpop.trf.xlu0
  %v85 = vpop.trf.xlu0
  %v86 = vlaneseq
  %v87 = vshrl.u32 %v86, 7
  %v88 = vadd.s32 %v87, 8
  %v89 = vld [vmem:[%s0] sm:$0x1]
  %v90 = vlaneseq
  %v91 = vshrl.u32 %v90, 7
  %v92 = vsub.s32 0, %v91
  %v93 = vrot.slane %v89, %v92
  %vm94 = vcmp.eq.s32.totalorder %v87, %v93
  %vm95 = vcmp.eq.s32.totalorder %v88, %v93
  %v96 = vsel %vm94, 1, 0
  %v97 = vsel %vm95, 1, 0
  %v98 = vcvt.s32.f32 %v96
  %v99 = vcvt.s32.f32 %v97
  %v100 = vld [vmem:[%s1] sm:$0x1]
  %v101 = vlaneseq
  %v102 = vshrl.u32 %v101, 7
  %v103 = vsub.s32 0, %v102
  %v104 = vrot.slane %v100, %v103
  %vm105 = vcmp.eq.s32.totalorder %v87, %v104
  %vm106 = vcmp.eq.s32.totalorder %v88, %v104
  %v107 = vsel %vm105, 1, 0
  %v108 = vsel %vm106, 1, 0
  %v109 = vcvt.s32.f32 %v107
  %v110 = vcvt.s32.f32 %v108
  %v111 = vld [vmem:[%s3] sm:$0xff]
  %v112 = vld [vmem:[%s3 + $0x8] sm:$0xff]
  %v113 = vld [vmem:[%s3 + $0x10] sm:$0xff]
  %v114 = vld [vmem:[%s3 + $0x18] sm:$0xff]
  %v115 = vld [vmem:[%s3 + $0x20] sm:$0xff]
  %v116 = vld [vmem:[%s3 + $0x28] sm:$0xff]
  %v117 = vld [vmem:[%s3 + $0x30] sm:$0xff]
  %v118 = vld [vmem:[%s3 + $0x38] sm:$0xff]
  %v119 = vld [vmem:[%s3 + $0x40] sm:$0xff]
  %v120 = vld [vmem:[%s3 + $0x48] sm:$0xff]
  %v121 = vld [vmem:[%s3 + $0x50] sm:$0xff]
  %v122 = vld [vmem:[%s3 + $0x58] sm:$0xff]
  %v123 = vld [vmem:[%s3 + $0x60] sm:$0xff]
  %v124 = vld [vmem:[%s3 + $0x68] sm:$0xff]
  %v125 = vld [vmem:[%s3 + $0x70] sm:$0xff]
  %v126 = vld [vmem:[%s3 + $0x78] sm:$0xff]
  %127 = vxpose.xlu0.b32.start [1/16] %v111, 128
  %128 = vxpose.xlu0.b32.cont [2/16] %v112, 128
  %129 = vxpose.xlu0.b32.cont [3/16] %v113, 128
  %130 = vxpose.xlu0.b32.cont [4/16] %v114, 128
  %131 = vxpose.xlu0.b32.cont [5/16] %v115, 128
  %132 = vxpose.xlu0.b32.cont [6/16] %v116, 128
  %133 = vxpose.xlu0.b32.cont [7/16] %v117, 128
  %134 = vxpose.xlu0.b32.cont [8/16] %v118, 128
  %135 = vxpose.xlu0.b32.cont [9/16] %v119, 128
  %136 = vxpose.xlu0.b32.cont [10/16] %v120, 128
  %137 = vxpose.xlu0.b32.cont [11/16] %v121, 128
  %138 = vxpose.xlu0.b32.cont [12/16] %v122, 128
  %139 = vxpose.xlu0.b32.cont [13/16] %v123, 128
  %140 = vxpose.xlu0.b32.cont [14/16] %v124, 128
  %141 = vxpose.xlu0.b32.cont [15/16] %v125, 128
  %142 = vxpose.xlu0.b32.end [16/16] %v126, 128
  %v143 = vpop.trf.xlu0
  %v144 = vpop.trf.xlu0
  %v145 = vpop.trf.xlu0
  %v146 = vpop.trf.xlu0
  %v147 = vpop.trf.xlu0
  %v148 = vpop.trf.xlu0
  %v149 = vpop.trf.xlu0
  %v150 = vpop.trf.xlu0
  %v151 = vpop.trf.xlu0
  %v152 = vpop.trf.xlu0
  %v153 = vpop.trf.xlu0
  %v154 = vpop.trf.xlu0
  %v155 = vpop.trf.xlu0
  %v156 = vpop.trf.xlu0
  %v157 = vpop.trf.xlu0
  %v158 = vpop.trf.xlu0
  %v159 = vld [vmem:[%s4] sm:$0xff]
  %v160 = vld [vmem:[%s4 + $0x8] sm:$0xff]
  %v161 = vld [vmem:[%s4 + $0x10] sm:$0xff]
  %v162 = vld [vmem:[%s4 + $0x18] sm:$0xff]
  %v163 = vld [vmem:[%s5] sm:$0xff]
  %v164 = vld [vmem:[%s5 + $0x8] sm:$0xff]
  %v165 = vld [vmem:[%s5 + $0x10] sm:$0xff]
  %v166 = vld [vmem:[%s5 + $0x18] sm:$0xff]
  %vm167 = vcmask 261120
  %v169 = vsel %vm167, %v163, 0
  %v172 = vsel %vm167, %v164, 0
  %v175 = vsel %vm167, %v165, 0
  %v178 = vsel %vm167, %v166, 0
  %180 = vmatprep.subr.mxu0 0.0
  %181 = vmatpush1.msra.mxu0 0.0
  %182 = vmatprep.subr.mxu0 0.0
  %183 = vmatpush1.msra.mxu0 0.0
  %184 = vmatprep.subr.mxu0 0.0
  %185 = vmatpush1.msra.mxu0 0.0
  %186 = vmatprep.subr.mxu0 0.0
  %187 = vmatpush1.msra.mxu0 0.0
  %188 = vmatprep.subr.mxu0 0.0
  %189 = vmatpush1.msra.mxu0 0.0
  %190 = vmatprep.subr.mxu0 0.0
  %191 = vmatpush1.msra.mxu0 0.0
  %192 = vmatprep.subr.mxu0 0.0
  %193 = vmatpush1.msra.mxu0 0.0
  %194 = vmatprep.subr.mxu0 0.0
  %195 = vmatpush1.msra.mxu0 0.0
  %196 = vmatprep.subr.mxu0 0.0
  %197 = vmatpush1.msra.mxu0 0.0
  %198 = vmatprep.subr.mxu0 0.0
  %199 = vmatpush1.msra.mxu0 0.0
  %200 = vmatprep.subr.mxu0 0.0
  %201 = vmatpush1.msra.mxu0 0.0
  %202 = vmatprep.subr.mxu0 0.0
  %203 = vmatpush1.msra.mxu0 0.0
  %204 = vmatprep.subr.mxu0 0.0
  %205 = vmatpush1.msra.mxu0 %v73
  %206 = vmatprep.subr.mxu0 0.0
  %207 = vmatpush1.msra.mxu0 %v72
  %208 = vmatprep.subr.mxu0 0.0
  %209 = vmatpush1.msra.mxu0 %v71
  %210 = vmatprep.subr.mxu0 0.0
  %211 = vmatpush1.msra.mxu0 %v70
  %212 = vmatprep.subr.mxu0 0.0
  %213 = vmatpush2.msra.mxu0 0.0
  %214 = vmatprep.subr.mxu0 0.0
  %215 = vmatpush2.msra.mxu0 0.0
  %216 = vmatprep.subr.mxu0 0.0
  %217 = vmatpush2.msra.mxu0 0.0
  %218 = vmatprep.subr.mxu0 0.0
  %219 = vmatpush2.msra.mxu0 0.0
  %220 = vmatprep.subr.mxu0 0.0
  %221 = vmatpush2.msra.mxu0 0.0
  %222 = vmatprep.subr.mxu0 0.0
  %223 = vmatpush2.msra.mxu0 0.0
  %224 = vmatprep.subr.mxu0 0.0
  %225 = vmatpush2.msra.mxu0 0.0
  %226 = vmatprep.subr.mxu0 0.0
  %227 = vmatpush2.msra.mxu0 0.0
  %228 = vmatprep.subr.mxu0 0.0
  %229 = vmatpush2.msra.mxu0 0.0
  %230 = vmatprep.subr.mxu0 0.0
  %231 = vmatpush2.msra.mxu0 0.0
  %232 = vmatprep.subr.mxu0 0.0
  %233 = vmatpush2.msra.mxu0 0.0
  %234 = vmatprep.subr.mxu0 0.0
  %235 = vmatpush2.msra.mxu0 0.0
  %236 = vmatprep.subr.mxu0 0.0
  %237 = vmatpush2.msra.mxu0 0.0
  %238 = vmatprep.subr.mxu0 0.0
  %239 = vmatpush2.msra.mxu0 0.0
  %240 = vmatprep.subr.mxu0 0.0
  %241 = vmatpush2.msra.mxu0 0.0
  %242 = vmatprep.subr.mxu0 0.0
  %243 = vmatpush2.msra.mxu0 0.0
  %244 = vmatprep.mubr.f32.mxu0 0.0
  %245 = vmatmul.mubr.f32.gmra.mxu0 %v169
  %v246 = vpop.f32.mrf.mxu0
  %v247 = vadd.f32 0.0, %v246
  %v248 = vpop.f32.mrf.mxu0
  %249 = vmatprep.mubr.f32.mxu0 0.0
  %250 = vmatmul.mubr.f32.gmra.mxu0 %v172
  %v251 = vpop.f32.mrf.mxu0
  %v252 = vadd.f32 0.0, %v251
  %v253 = vpop.f32.mrf.mxu0
  %254 = vmatprep.mubr.f32.mxu0 0.0
  %255 = vmatmul.mubr.f32.gmra.mxu0 %v175
  %v256 = vpop.f32.mrf.mxu0
  %v257 = vadd.f32 0.0, %v256
  %v258 = vpop.f32.mrf.mxu0
  %259 = vmatprep.mubr.f32.mxu0 0.0
  %260 = vmatmul.mubr.f32.gmra.mxu0 %v178
  %v261 = vpop.f32.mrf.mxu0
  %v262 = vadd.f32 0.0, %v261
  %v263 = vpop.f32.mrf.mxu0
  %264 = vdwg.mxu0
  %vm265 = vcmask 392192
  %v267 = vsel %vm265, %v159, 0
  %v270 = vsel %vm265, %v160, 0
  %v273 = vsel %vm265, %v161, 0
  %v276 = vsel %vm265, %v162, 0
  %278 = vmatprep.subr.mxu0 0.0
  %279 = vmatpush1.msra.mxu0 0.0
  %280 = vmatprep.subr.mxu0 0.0
  %281 = vmatpush1.msra.mxu0 0.0
  %282 = vmatprep.subr.mxu0 0.0
  %283 = vmatpush1.msra.mxu0 0.0
  %284 = vmatprep.subr.mxu0 0.0
  %285 = vmatpush1.msra.mxu0 0.0
  %286 = vmatprep.subr.mxu0 0.0
  %287 = vmatpush1.msra.mxu0 0.0
  %288 = vmatprep.subr.mxu0 0.0
  %289 = vmatpush1.msra.mxu0 0.0
  %290 = vmatprep.subr.mxu0 0.0
  %291 = vmatpush1.msra.mxu0 0.0
  %292 = vmatprep.subr.mxu0 0.0
  %293 = vmatpush1.msra.mxu0 0.0
  %294 = vmatprep.subr.mxu0 0.0
  %295 = vmatpush1.msra.mxu0 0.0
  %296 = vmatprep.subr.mxu0 0.0
  %297 = vmatpush1.msra.mxu0 0.0
  %298 = vmatprep.subr.mxu0 0.0
  %299 = vmatpush1.msra.mxu0 %v144
  %300 = vmatprep.subr.mxu0 0.0
  %301 = vmatpush1.msra.mxu0 %v143
  %302 = vmatprep.subr.mxu0 0.0
  %303 = vmatpush1.msra.mxu0 %v110
  %304 = vmatprep.subr.mxu0 0.0
  %305 = vmatpush1.msra.mxu0 %v109
  %306 = vmatprep.subr.mxu0 0.0
  %307 = vmatpush1.msra.mxu0 %v99
  %308 = vmatprep.subr.mxu0 0.0
  %309 = vmatpush1.msra.mxu0 %v98
  %310 = vmatprep.subr.mxu0 0.0
  %311 = vmatpush2.msra.mxu0 0.0
  %312 = vmatprep.subr.mxu0 0.0
  %313 = vmatpush2.msra.mxu0 0.0
  %314 = vmatprep.subr.mxu0 0.0
  %315 = vmatpush2.msra.mxu0 0.0
  %316 = vmatprep.subr.mxu0 0.0
  %317 = vmatpush2.msra.mxu0 0.0
  %318 = vmatprep.subr.mxu0 0.0
  %319 = vmatpush2.msra.mxu0 0.0
  %320 = vmatprep.subr.mxu0 0.0
  %321 = vmatpush2.msra.mxu0 0.0
  %322 = vmatprep.subr.mxu0 0.0
  %323 = vmatpush2.msra.mxu0 0.0
  %324 = vmatprep.subr.mxu0 0.0
  %325 = vmatpush2.msra.mxu0 0.0
  %326 = vmatprep.subr.mxu0 0.0
  %327 = vmatpush2.msra.mxu0 0.0
  %328 = vmatprep.subr.mxu0 0.0
  %329 = vmatpush2.msra.mxu0 0.0
  %330 = vmatprep.subr.mxu0 0.0
  %331 = vmatpush2.msra.mxu0 0.0
  %332 = vmatprep.subr.mxu0 0.0
  %333 = vmatpush2.msra.mxu0 0.0
  %334 = vmatprep.subr.mxu0 0.0
  %335 = vmatpush2.msra.mxu0 0.0
  %336 = vmatprep.subr.mxu0 0.0
  %337 = vmatpush2.msra.mxu0 0.0
  %338 = vmatprep.subr.mxu0 0.0
  %339 = vmatpush2.msra.mxu0 0.0
  %340 = vmatprep.subr.mxu0 0.0
  %341 = vmatpush2.msra.mxu0 0.0
  %342 = vmatprep.mubr.f32.mxu0 0.0
  %343 = vmatmul.mubr.f32.gmra.mxu0 %v267
  %v344 = vpop.f32.mrf.mxu0
  %v345 = vadd.f32 %v247, %v344
  %v346 = vpop.f32.mrf.mxu0
  %347 = vmatprep.mubr.f32.mxu0 0.0
  %348 = vmatmul.mubr.f32.gmra.mxu0 %v270
  %v349 = vpop.f32.mrf.mxu0
  %v350 = vadd.f32 %v252, %v349
  %v351 = vpop.f32.mrf.mxu0
  %352 = vmatprep.mubr.f32.mxu0 0.0
  %353 = vmatmul.mubr.f32.gmra.mxu0 %v273
  %v354 = vpop.f32.mrf.mxu0
  %v355 = vadd.f32 %v257, %v354
  %v356 = vpop.f32.mrf.mxu0
  %357 = vmatprep.mubr.f32.mxu0 0.0
  %358 = vmatmul.mubr.f32.gmra.mxu0 %v276
  %v359 = vpop.f32.mrf.mxu0
  %v360 = vadd.f32 %v262, %v359
  %v361 = vpop.f32.mrf.mxu0
  %362 = vdwg.mxu0
  %v363 = vld [vmem:[%s6] sm:$0xff]
  %v364 = vld [vmem:[%s6 + $0x8] sm:$0xff]
  %v365 = vld [vmem:[%s6 + $0x10] sm:$0xff]
  %v366 = vld [vmem:[%s6 + $0x18] sm:$0xff]
  %368 = vset.pattern.permute.xlu0 0
  %369 = vperm.xlu0 %368, %v363
  %v370 = vpop.permute.xlu0 %369
  %373 = vset.pattern.permute.xlu0 0
  %374 = vperm.xlu0 %373, %v364
  %v375 = vpop.permute.xlu0 %374
  %378 = vset.pattern.permute.xlu0 0
  %379 = vperm.xlu0 %378, %v365
  %v380 = vpop.permute.xlu0 %379
  %383 = vset.pattern.permute.xlu0 0
  %384 = vperm.xlu0 %383, %v366
  %v385 = vpop.permute.xlu0 %384
  %v387 = vadd.f32 %v345, %v370
  %v388 = vadd.f32 %v350, %v375
  %v389 = vadd.f32 %v355, %v380
  %v390 = vadd.f32 %v360, %v385
  %v391 = vsub.f32 0.0, %v387
  %v392 = vsub.f32 0.0, %v388
  %v393 = vsub.f32 0.0, %v389
  %v394 = vsub.f32 0.0, %v390
  %v395 = vmul.f32 %v391, 1.442695
  %v396 = vpow.pop %v395
  %v397 = vmul.f32 %v392, 1.442695
  %v398 = vpow.pop %v397
  %v399 = vmul.f32 %v393, 1.442695
  %v400 = vpow.pop %v399
  %v401 = vmul.f32 %v394, 1.442695
  %v402 = vpow.pop %v401
  %v403 = vadd.f32 %v396, 1.0
  %v404 = vadd.f32 %v398, 1.0
  %v405 = vadd.f32 %v400, 1.0
  %v406 = vadd.f32 %v402, 1.0
  %v407 = vrcp.pop %v403
  %v408 = vrcp.pop %v404
  %v409 = vrcp.pop %v405
  %v410 = vrcp.pop %v406
  %v411 = vmul.f32 %v387, %v407
  %v412 = vmul.f32 %v388, %v408
  %v413 = vmul.f32 %v389, %v409
  %v414 = vmul.f32 %v390, %v410
  %v415 = vld [vmem:[%s7] sm:$0xff]
  %v416 = vld [vmem:[%s7 + $0x8] sm:$0xff]
  %v417 = vld [vmem:[%s7 + $0x10] sm:$0xff]
  %v418 = vld [vmem:[%s7 + $0x18] sm:$0xff]
  %v419 = vld [vmem:[%s8] sm:$0xff]
  %v420 = vld [vmem:[%s8 + $0x8] sm:$0xff]
  %v421 = vld [vmem:[%s8 + $0x10] sm:$0xff]
  %v422 = vld [vmem:[%s8 + $0x18] sm:$0xff]
  %424 = vset.pattern.permute.xlu0 0
  %425 = vperm.xlu0 %424, %v419
  %v426 = vpop.permute.xlu0 %425
  %429 = vset.pattern.permute.xlu0 0
  %430 = vperm.xlu0 %429, %v420
  %v431 = vpop.permute.xlu0 %430
  %434 = vset.pattern.permute.xlu0 0
  %435 = vperm.xlu0 %434, %v421
  %v436 = vpop.permute.xlu0 %435
  %439 = vset.pattern.permute.xlu0 0
  %440 = vperm.xlu0 %439, %v422
  %v441 = vpop.permute.xlu0 %440
  %v444 = vsel %vm167, %v415, 0
  %v447 = vsel %vm167, %v416, 0
  %v450 = vsel %vm167, %v417, 0
  %v453 = vsel %vm167, %v418, 0
  %455 = vmatprep.subr.mxu0 0.0
  %456 = vmatpush1.msra.mxu0 0.0
  %457 = vmatprep.subr.mxu0 0.0
  %458 = vmatpush1.msra.mxu0 0.0
  %459 = vmatprep.subr.mxu0 0.0
  %460 = vmatpush1.msra.mxu0 0.0
  %461 = vmatprep.subr.mxu0 0.0
  %462 = vmatpush1.msra.mxu0 0.0
  %463 = vmatprep.subr.mxu0 0.0
  %464 = vmatpush1.msra.mxu0 0.0
  %465 = vmatprep.subr.mxu0 0.0
  %466 = vmatpush1.msra.mxu0 0.0
  %467 = vmatprep.subr.mxu0 0.0
  %468 = vmatpush1.msra.mxu0 0.0
  %469 = vmatprep.subr.mxu0 0.0
  %470 = vmatpush1.msra.mxu0 0.0
  %471 = vmatprep.subr.mxu0 0.0
  %472 = vmatpush1.msra.mxu0 0.0
  %473 = vmatprep.subr.mxu0 0.0
  %474 = vmatpush1.msra.mxu0 0.0
  %475 = vmatprep.subr.mxu0 0.0
  %476 = vmatpush1.msra.mxu0 0.0
  %477 = vmatprep.subr.mxu0 0.0
  %478 = vmatpush1.msra.mxu0 0.0
  %479 = vmatprep.subr.mxu0 0.0
  %480 = vmatpush1.msra.mxu0 %v414
  %481 = vmatprep.subr.mxu0 0.0
  %482 = vmatpush1.msra.mxu0 %v413
  %483 = vmatprep.subr.mxu0 0.0
  %484 = vmatpush1.msra.mxu0 %v412
  %485 = vmatprep.subr.mxu0 0.0
  %486 = vmatpush1.msra.mxu0 %v411
  %487 = vmatprep.subr.mxu0 0.0
  %488 = vmatpush2.msra.mxu0 0.0
  %489 = vmatprep.subr.mxu0 0.0
  %490 = vmatpush2.msra.mxu0 0.0
  %491 = vmatprep.subr.mxu0 0.0
  %492 = vmatpush2.msra.mxu0 0.0
  %493 = vmatprep.subr.mxu0 0.0
  %494 = vmatpush2.msra.mxu0 0.0
  %495 = vmatprep.subr.mxu0 0.0
  %496 = vmatpush2.msra.mxu0 0.0
  %497 = vmatprep.subr.mxu0 0.0
  %498 = vmatpush2.msra.mxu0 0.0
  %499 = vmatprep.subr.mxu0 0.0
  %500 = vmatpush2.msra.mxu0 0.0
  %501 = vmatprep.subr.mxu0 0.0
  %502 = vmatpush2.msra.mxu0 0.0
  %503 = vmatprep.subr.mxu0 0.0
  %504 = vmatpush2.msra.mxu0 0.0
  %505 = vmatprep.subr.mxu0 0.0
  %506 = vmatpush2.msra.mxu0 0.0
  %507 = vmatprep.subr.mxu0 0.0
  %508 = vmatpush2.msra.mxu0 0.0
  %509 = vmatprep.subr.mxu0 0.0
  %510 = vmatpush2.msra.mxu0 0.0
  %511 = vmatprep.subr.mxu0 0.0
  %512 = vmatpush2.msra.mxu0 0.0
  %513 = vmatprep.subr.mxu0 0.0
  %514 = vmatpush2.msra.mxu0 0.0
  %515 = vmatprep.subr.mxu0 0.0
  %516 = vmatpush2.msra.mxu0 0.0
  %517 = vmatprep.subr.mxu0 0.0
  %518 = vmatpush2.msra.mxu0 0.0
  %519 = vmatprep.mubr.f32.mxu0 0.0
  %520 = vmatmul.mubr.f32.gmra.mxu0 %v444
  %v521 = vpop.f32.mrf.mxu0
  %v522 = vadd.f32 %v426, %v521
  %v523 = vpop.f32.mrf.mxu0
  %524 = vmatprep.mubr.f32.mxu0 0.0
  %525 = vmatmul.mubr.f32.gmra.mxu0 %v447
  %v526 = vpop.f32.mrf.mxu0
  %v527 = vadd.f32 %v431, %v526
  %v528 = vpop.f32.mrf.mxu0
  %529 = vmatprep.mubr.f32.mxu0 0.0
  %530 = vmatmul.mubr.f32.gmra.mxu0 %v450
  %v531 = vpop.f32.mrf.mxu0
  %v532 = vadd.f32 %v436, %v531
  %v533 = vpop.f32.mrf.mxu0
  %534 = vmatprep.mubr.f32.mxu0 0.0
  %535 = vmatmul.mubr.f32.gmra.mxu0 %v453
  %v536 = vpop.f32.mrf.mxu0
  %v537 = vadd.f32 %v441, %v536
  %v538 = vpop.f32.mrf.mxu0
  %539 = vdwg.mxu0
  %v540 = vsub.f32 0.0, %v522
  %v541 = vsub.f32 0.0, %v527
  %v542 = vsub.f32 0.0, %v532
  %v543 = vsub.f32 0.0, %v537
  %v544 = vmul.f32 %v540, 1.442695
  %v545 = vpow.pop %v544
  %v546 = vmul.f32 %v541, 1.442695
  %v547 = vpow.pop %v546
  %v548 = vmul.f32 %v542, 1.442695
  %v549 = vpow.pop %v548
  %v550 = vmul.f32 %v543, 1.442695
  %v551 = vpow.pop %v550
  %v552 = vadd.f32 %v545, 1.0
  %v553 = vadd.f32 %v547, 1.0
  %v554 = vadd.f32 %v549, 1.0
  %v555 = vadd.f32 %v551, 1.0
  %v556 = vrcp.pop %v552
  %v557 = vrcp.pop %v553
  %v558 = vrcp.pop %v554
  %v559 = vrcp.pop %v555
  %v560 = vmul.f32 %v522, %v556
  %v561 = vmul.f32 %v527, %v557
  %v562 = vmul.f32 %v532, %v558
  %v563 = vmul.f32 %v537, %v559
  %v564 = vadd.f32 %v70, %v560
  %v565 = vadd.f32 %v71, %v561
  %v566 = vadd.f32 %v72, %v562
  %v567 = vadd.f32 %v73, %v563
  %v568 = vadd.f32 %v564, %v565
  %v569 = vadd.f32 %v568, %v566
  %v570 = vadd.f32 %v569, %v567
  %v571 = vrot.slane %v570, 4
  %v572 = vadd.f32 %v570, %v571
  %v573 = vrot.slane %v572, 2
  %v574 = vadd.f32 %v572, %v573
  %v575 = vrot.slane %v574, 1
  %v576 = vadd.f32 %v574, %v575
  %v577 = vrcp.pop 32.0
  %v578 = vmul.f32 %v576, %v577
  %v579 = vsub.f32 %v564, %v578
  %v580 = vsub.f32 %v565, %v578
  %v581 = vsub.f32 %v566, %v578
  %v582 = vsub.f32 %v567, %v578
  %v583 = vmul.f32 %v579, %v579
  %v584 = vmul.f32 %v580, %v580
  %v585 = vmul.f32 %v581, %v581
  %v586 = vmul.f32 %v582, %v582
  %v587 = vadd.f32 %v583, %v584
  %v588 = vadd.f32 %v587, %v585
  %v589 = vadd.f32 %v588, %v586
  %v590 = vrot.slane %v589, 4
  %v591 = vadd.f32 %v589, %v590
  %v592 = vrot.slane %v591, 2
  %v593 = vadd.f32 %v591, %v592
  %v594 = vrot.slane %v593, 1
  %v595 = vadd.f32 %v593, %v594
  %v596 = vmul.f32 %v595, %v577
  %v597 = vadd.f32 %v596, 1e-05
  %v598 = vrsqrt.pop %v597
  %v599 = vmul.f32 %v579, %v598
  %v600 = vmul.f32 %v580, %v598
  %v601 = vmul.f32 %v581, %v598
  %v602 = vmul.f32 %v582, %v598
  %v603 = vld [vmem:[%s9] sm:$0xff]
  %v604 = vld [vmem:[%s9 + $0x8] sm:$0xff]
  %v605 = vld [vmem:[%s9 + $0x10] sm:$0xff]
  %v606 = vld [vmem:[%s9 + $0x18] sm:$0xff]
  %608 = vset.pattern.permute.xlu0 0
  %609 = vperm.xlu0 %608, %v603
  %v610 = vpop.permute.xlu0 %609
  %613 = vset.pattern.permute.xlu0 0
  %614 = vperm.xlu0 %613, %v604
  %v615 = vpop.permute.xlu0 %614
  %618 = vset.pattern.permute.xlu0 0
  %619 = vperm.xlu0 %618, %v605
  %v620 = vpop.permute.xlu0 %619
  %623 = vset.pattern.permute.xlu0 0
  %624 = vperm.xlu0 %623, %v606
  %v625 = vpop.permute.xlu0 %624
  %v627 = vmul.f32 %v599, %v610
  %v628 = vmul.f32 %v600, %v615
  %v629 = vmul.f32 %v601, %v620
  %v630 = vmul.f32 %v602, %v625
  %v631 = vld [vmem:[%s10] sm:$0xff]
  %v632 = vld [vmem:[%s10 + $0x8] sm:$0xff]
  %v633 = vld [vmem:[%s10 + $0x10] sm:$0xff]
  %v634 = vld [vmem:[%s10 + $0x18] sm:$0xff]
  %636 = vset.pattern.permute.xlu0 0
  %637 = vperm.xlu0 %636, %v631
  %v638 = vpop.permute.xlu0 %637
  %641 = vset.pattern.permute.xlu0 0
  %642 = vperm.xlu0 %641, %v632
  %v643 = vpop.permute.xlu0 %642
  %646 = vset.pattern.permute.xlu0 0
  %647 = vperm.xlu0 %646, %v633
  %v648 = vpop.permute.xlu0 %647
  %651 = vset.pattern.permute.xlu0 0
  %652 = vperm.xlu0 %651, %v634
  %v653 = vpop.permute.xlu0 %652
  %v655 = vadd.f32 %v627, %v638
  %v656 = vadd.f32 %v628, %v643
  %v657 = vadd.f32 %v629, %v648
  %v658 = vadd.f32 %v630, %v653
  %659 = vxpose.xlu0.b32.start [1/16] %v655, 128
  %660 = vxpose.xlu0.b32.cont [2/16] %v656, 128
  %661 = vxpose.xlu0.b32.cont [3/16] %v657, 128
  %662 = vxpose.xlu0.b32.cont [4/16] %v658, 128
  %663 = vxpose.xlu0.b32.cont [5/16] 0.0, 128
  %664 = vxpose.xlu0.b32.cont [6/16] 0.0, 128
  %665 = vxpose.xlu0.b32.cont [7/16] 0.0, 128
  %666 = vxpose.xlu0.b32.cont [8/16] 0.0, 128
  %667 = vxpose.xlu0.b32.cont [9/16] 0.0, 128
  %668 = vxpose.xlu0.b32.cont [10/16] 0.0, 128
  %669 = vxpose.xlu0.b32.cont [11/16] 0.0, 128
  %670 = vxpose.xlu0.b32.cont [12/16] 0.0, 128
  %671 = vxpose.xlu0.b32.cont [13/16] 0.0, 128
  %672 = vxpose.xlu0.b32.cont [14/16] 0.0, 128
  %673 = vxpose.xlu0.b32.cont [15/16] 0.0, 128
  %674 = vxpose.xlu0.b32.end [16/16] 0.0, 128
  %v675 = vpop.trf.xlu0
  %v676 = vpop.trf.xlu0
  %v677 = vpop.trf.xlu0
  %v678 = vpop.trf.xlu0
  %v679 = vpop.trf.xlu0
  %v680 = vpop.trf.xlu0
  %v681 = vpop.trf.xlu0
  %v682 = vpop.trf.xlu0
  %v683 = vpop.trf.xlu0
  %v684 = vpop.trf.xlu0
  %v685 = vpop.trf.xlu0
  %v686 = vpop.trf.xlu0
  %v687 = vpop.trf.xlu0
  %v688 = vpop.trf.xlu0
  %v689 = vpop.trf.xlu0
  %v690 = vpop.trf.xlu0
  %691 = vst.msk [vmem:[%s11] sm:$0xff] %vm167, %v675
  %692 = vst.msk [vmem:[%s11 + $0x8] sm:$0xff] %vm167, %v676
  %693 = vst.msk [vmem:[%s11 + $0x10] sm:$0xff] %vm167, %v677
  %694 = vst.msk [vmem:[%s11 + $0x18] sm:$0xff] %vm167, %v678
  %695 = vst.msk [vmem:[%s11 + $0x20] sm:$0xff] %vm167, %v679
  %696 = vst.msk [vmem:[%s11 + $0x28] sm:$0xff] %vm167, %v680
  %697 = vst.msk [vmem:[%s11 + $0x30] sm:$0xff] %vm167, %v681
  %698 = vst.msk [vmem:[%s11 + $0x38] sm:$0xff] %vm167, %v682
  %699 = vst.msk [vmem:[%s11 + $0x40] sm:$0xff] %vm167, %v683
  %700 = vst.msk [vmem:[%s11 + $0x48] sm:$0xff] %vm167, %v684
  %701 = vst.msk [vmem:[%s11 + $0x50] sm:$0xff] %vm167, %v685
  %702 = vst.msk [vmem:[%s11 + $0x58] sm:$0xff] %vm167, %v686
  %703 = vst.msk [vmem:[%s11 + $0x60] sm:$0xff] %vm167, %v687
  %704 = vst.msk [vmem:[%s11 + $0x68] sm:$0xff] %vm167, %v688
  %705 = vst.msk [vmem:[%s11 + $0x70] sm:$0xff] %vm167, %v689
  %706 = vst.msk [vmem:[%s11 + $0x78] sm:$0xff] %vm167, %v690
  // Predicated region
  $region46: #{tpu_custom_call.1} parent=0 // pred_check
    _
  $region47: #{tpu_custom_call.1} parent=0 // pred_check_branch
    %708 = sbr.rel (0) target = $region49
  $region48: #{tpu_custom_call.1} parent=0 // pred_region
    _
  $region49: #{tpu_custom_call.1} parent=0 // pred_fallthru
    _
  // Predicated region
  $region50: #{tpu_custom_call.1} parent=0 // pred_check
    _
  $region51: #{tpu_custom_call.1} parent=0 // pred_check_branch
    %710 = sbr.rel (0) target = $region53
  $region52: #{tpu_custom_call.1} parent=0 // pred_region
    _
  $region53: #{tpu_custom_call.1} parent=0 // pred_fallthru
    _

</llo_original>
